<compile_context>
chip_gen: v7x
topology: tpu7x:2x2x1
jax: 0.10.0
libtpu: 0.0.40
codegen_flags: <defaults>
</compile_context>

<pallas_src>
import functools

import jax
import jax.numpy as jnp
from jax.experimental import pallas as pl
from jax.experimental.pallas import tpu as pltpu


def _round_up(x, m):
    return ((x + m - 1) // m) * m


def _cdiv(a, b):
    return (a + b - 1) // b


_DIVISORS_128 = (1, 2, 4, 8, 16, 32, 64, 128)


def _segment_geometry(d):
    """Segment width (lanes per pair) and pairs per 128-lane row."""
    if d <= 128:
        seg = next(s for s in _DIVISORS_128 if s >= d)
        return seg, 128 // seg
    return _round_up(d, 128), 1


def _tpu_vmem_bytes():
    try:
        info = pltpu.get_tpu_info()
        return int(getattr(info, "vmem_capacity_bytes", 64 * 1024 * 1024))
    except Exception:
        return 64 * 1024 * 1024


def _cluster_loss_kernel(seg_ref, a_ref, o_ref, l_ref, out_ref, *,
                         c, pos_margin, neg_margin, n_pairs, pack, row_tile):
    """One grid step: a (T, L) slab of packed pair rows -> one f32 partial sum.

    Each packed row carries `pack` (anchor, other) pairs, each pair occupying
    `seg_width = L // pack` consecutive lanes.  The Poincare distance only
    needs the three per-pair reductions ||x||^2, ||y||^2, <x, y>, obtained via
    one MXU matmul per product against a resident 0/1 segment matrix.
    """
    x = a_ref[...]                      # (T, L) native dtype (bf16 stays bf16)
    y = o_ref[...]
    seg = seg_ref[...]                  # (L, pack) 0/1, same dtype as x
    lab = l_ref[...]                    # (T, pack) float32

    # Elementwise products in the native dtype; segmented row reductions
    # accumulate in f32 on the MXU (lanes stay dense, XLU stays free).
    xx = x * x
    yy = y * y
    xyp = x * y
    x2 = jnp.dot(xx, seg, preferred_element_type=jnp.float32)    # (T, pack)
    y2 = jnp.dot(yy, seg, preferred_element_type=jnp.float32)
    xy = jnp.dot(xyp, seg, preferred_element_type=jnp.float32)

    c_f = float(c)
    minus_2c_xy = (-2.0 * c_f) * xy
    coef_x = 1.0 + minus_2c_xy + c_f * y2          # multiplies (-x) in mobius_add
    coef_y = 1.0 - c_f * x2                        # multiplies y
    denom = jnp.maximum(1.0 + minus_2c_xy + (c_f * c_f) * x2 * y2, 1e-15)

    # ||mobius_add(-x, y)||^2 expanded from per-pair scalars; no (T, L)
    # numerator is ever materialized.  (Can cancel when x ~= y; masked by the
    # positive-margin relu.)
    num_sq = (coef_x * coef_x * x2
              - 2.0 * coef_x * coef_y * xy
              + coef_y * coef_y * y2)
    inv_denom = pl.reciprocal(denom)               # exact; tiny (T, pack)
    m_norm = jnp.sqrt(jnp.maximum(num_sq, 1e-15)) * inv_denom

    sqrt_c = c_f ** 0.5
    z = jnp.clip(sqrt_c * m_norm, 0.0, 1.0 - 1e-6)
    # dist = 2/sqrt(c) * artanh(z) = 1/sqrt(c) * log((1+z)/(1-z))
    dist = (1.0 / sqrt_c) * jnp.log((1.0 + z) * pl.reciprocal(1.0 - z))

    pos = lab * jnp.maximum(dist - float(pos_margin), 0.0)
    neg = (1.0 - lab) * jnp.maximum(float(neg_margin) - dist, 0.0)

    # Mask pairs that are out of range: the row remainder of the last block
    # (unspecified OOB reads) and any pairs added to round N up to a multiple
    # of `pack`.  The where() also kills NaN/Inf arising from garbage rows.
    row_idx = (pl.program_id(0) * row_tile
               + jax.lax.broadcasted_iota(jnp.int32, pos.shape, 0))
    pair_idx = row_idx * pack + jax.lax.broadcasted_iota(jnp.int32, pos.shape, 1)
    loss = jnp.where(pair_idx < n_pairs, pos + neg, 0.0)

    # Per-block partial sum -> a single tiny store instead of a lane-sparse
    # (T, pack) writeback plus a separate XLA reduce over HBM.
    out_ref[...] = jnp.sum(loss, keepdims=True)[None]


def clustering_contrastive_loss(rep_anchor, rep_other, labels, *,
                                curvature=1.0,
                                positive_margin=1.0,
                                negative_margin=3.0,
                                max_rows_per_block=None):
    """Pallas TPU forward pass of ClusteringConstrastiveLoss.

    rep_anchor / rep_other : (N, D) points inside the Poincare ball (f32/bf16).
    labels                 : (N,) 1 = positive subsumption, 0 = negative.
    Returns the scalar mean loss (float32).
    """
    n, d = rep_anchor.shape
    assert n >= 1 and rep_other.shape == (n, d) and labels.shape[0] == n
    in_dtype = rep_anchor.dtype
    itemsize = jnp.dtype(in_dtype).itemsize

    seg_width, pack = _segment_geometry(d)
    lanes = seg_width * pack                       # 128 whenever d <= 128

    # --- packed 2-D views ----------------------------------------------------
    # Zero-copy path: D already segment-sized and N % pack == 0 -> the
    # (N, D) -> (N//pack, pack*D) reshape is a free row-major merge (no extra
    # HBM pass).  Otherwise we must copy once to pad D (and N to a pack
    # multiple); padded pairs are masked exactly inside the kernel.
    need_pad = (seg_width != d) or (n % pack != 0)
    if need_pad:
        n_pad = _round_up(n, pack)

        def pad_pack(v):
            v = jnp.pad(v, ((0, n_pad - n), (0, seg_width - d)))
            return v.reshape(n_pad // pack, lanes)

        a_2d = pad_pack(rep_anchor)
        o_2d = pad_pack(rep_other)
        lab_1d = jnp.pad(labels.reshape(n).astype(jnp.float32),
                         (0, n_pad - n), constant_values=1.0)
    else:
        n_pad = n
        a_2d = rep_anchor.reshape(n // pack, lanes)
        o_2d = rep_other.reshape(n // pack, lanes)
        lab_1d = labels.reshape(n).astype(jnp.float32)
    n_rows = n_pad // pack
    lab_2d = lab_1d.reshape(n_rows, pack)

    # 0/1 segment matrix: one MXU matmul performs `pack` per-pair row sums.
    lane_id = jnp.arange(lanes)[:, None]
    seg_lo = jnp.arange(pack)[None, :] * seg_width
    seg_m = ((lane_id >= seg_lo) & (lane_id < seg_lo + seg_width)).astype(in_dtype)

    # --- generation-aware tiling ----------------------------------------------
    vmem_cap = _tpu_vmem_bytes()
    big_vmem = vmem_cap >= 100 * 1024 * 1024       # v5e / v6e (128 MiB VMEM)
    if big_vmem:
        work_budget = 72 * 1024 * 1024
        in_block_cap = 6 * 1024 * 1024
        vmem_limit = 96 * 1024 * 1024
    else:                                          # v7x (64 MiB) or unknown
        work_budget = 28 * 1024 * 1024
        in_block_cap = 2 * 1024 * 1024
        vmem_limit = 48 * 1024 * 1024

    sublane = max(8, 32 // itemsize)               # 8 for f32 / 16 for bf16
    # Per packed row: double-buffered input blocks + elementwise temporaries
    # (xx/yy/xyp in native dtype) + labels + the small (T, pack) f32 algebra.
    per_row = (2 * 2 * lanes * itemsize
               + 4 * lanes * max(itemsize, 2)
               + 2 * pack * 4
               + 24 * pack * 4 + 64)
    row_tile = min(work_budget // per_row, in_block_cap // (lanes * itemsize))
    if max_rows_per_block is not None:
        row_tile = min(row_tile, int(max_rows_per_block))
    if not big_vmem:
        # Keep >= ~4 grid steps so v7x can shard the grid over both TensorCores.
        row_tile = min(row_tile, _round_up(_cdiv(n_rows, 4), sublane))
    row_tile = max(sublane, (row_tile // sublane) * sublane)
    if row_tile >= n_rows:
        row_tile = n_rows                          # one block == array extent
    grid = _cdiv(n_rows, row_tile)

    kernel = functools.partial(
        _cluster_loss_kernel,
        c=float(curvature),
        pos_margin=float(positive_margin),
        neg_margin=float(negative_margin),
        n_pairs=int(n),
        pack=int(pack),
        row_tile=int(row_tile),
    )

    partials = pl.pallas_call(
        kernel,
        out_shape=jax.ShapeDtypeStruct((grid, 1, 1), jnp.float32),
        grid=(grid,),
        in_specs=[
            pl.BlockSpec((lanes, pack), lambda i: (0, 0)),       # seg matrix (resident)
            pl.BlockSpec((row_tile, lanes), lambda i: (i, 0)),   # rep_anchor (packed)
            pl.BlockSpec((row_tile, lanes), lambda i: (i, 0)),   # rep_other  (packed)
            pl.BlockSpec((row_tile, pack), lambda i: (i, 0)),    # labels
        ],
        out_specs=pl.BlockSpec((1, 1, 1), lambda i: (i, 0, 0)),
        compiler_params=pltpu.CompilerParams(
            dimension_semantics=("parallel",),
            vmem_limit_bytes=int(vmem_limit),
        ),
    )(seg_m, a_2d, o_2d, lab_2d)

    # Final (tiny) reduce + mean in XLA.
    return jnp.sum(partials) / jnp.float32(n)


def _reference_loss(x, y, labels, c, pos_margin, neg_margin):
    """Plain-JAX reference of the geoopt PoincareBall.dist based loss."""
    x = x.astype(jnp.float32)
    y = y.astype(jnp.float32)
    lab = labels.astype(jnp.float32)
    x2 = jnp.sum(x * x, -1)
    y2 = jnp.sum(y * y, -1)
    xy = jnp.sum(x * y, -1)
    coef_x = 1.0 - 2.0 * c * xy + c * y2
    coef_y = 1.0 - c * x2
    denom = 1.0 - 2.0 * c * xy + c * c * x2 * y2
    m = (coef_x[:, None] * (-x) + coef_y[:, None] * y) / denom[:, None]
    m_norm = jnp.sqrt(jnp.maximum(jnp.sum(m * m, -1), 1e-15))
    sqrt_c = jnp.sqrt(c)
    z = jnp.clip(sqrt_c * m_norm, 0.0, 1.0 - 1e-6)
    dist = (1.0 / sqrt_c) * jnp.log((1.0 + z) / (1.0 - z))
    pos = lab * jnp.maximum(dist - pos_margin, 0.0)
    neg = (1.0 - lab) * jnp.maximum(neg_margin - dist, 0.0)
    return jnp.mean(pos + neg)


if __name__ == "__main__":
    # Deterministic "module parameters" (synthetic, not loaded from a checkpoint).
    CURVATURE = 1.0           # PoincareBall(c=1.0)
    POSITIVE_MARGIN = 1.0
    NEGATIVE_MARGIN = 3.0

    root_key = jax.random.PRNGKey(0)

    def make_inputs(key, n, d, dtype):
        k1, k2, k3, k4 = jax.random.split(key, 4)

        # Points must lie inside the Poincare ball: scale to norm <= 0.8/sqrt(c).
        def to_ball(v, kr):
            norm = jnp.linalg.norm(v, axis=-1, keepdims=True)
            return v / jnp.maximum(norm, 1e-6) * 0.8 * jax.random.uniform(kr, norm.shape)

        a = to_ball(jax.random.normal(k1, (n, d), jnp.float32), k3).astype(dtype)
        o = to_ball(jax.random.normal(k2, (n, d), jnp.float32), k4).astype(dtype)
        lab = (jnp.arange(n) % 2).astype(jnp.int32)   # alternating pos/neg pairs
        return a, o, lab

    # (N, D, dtype, max_rows_per_block, rtol, atol)
    cases = [
        (64, 32, jnp.float32, None, 1e-4, 1e-5),   # pack=4, zero-copy reshape path
        (80, 32, jnp.float32, 16,   1e-4, 1e-5),   # multi-block grid + row-remainder mask
        (48, 48, jnp.float32, None, 1e-4, 1e-5),   # D=48 -> segment 64, pack=2, pad path
        (62, 32, jnp.float32, None, 1e-4, 1e-5),   # N % pack != 0 -> pair-index mask
        (64, 32, jnp.bfloat16, None, 1e-1, 5e-2),  # bf16 elementwise + bf16 MXU path
    ]

    for idx, (n, d, dt, mrpb, rtol, atol) in enumerate(cases):
        a, o, lab = make_inputs(jax.random.fold_in(root_key, idx), n, d, dt)
        loss_fn = jax.jit(functools.partial(
            clustering_contrastive_loss,
            curvature=CURVATURE,
            positive_margin=POSITIVE_MARGIN,
            negative_margin=NEGATIVE_MARGIN,
            max_rows_per_block=mrpb))
        loss = jax.block_until_ready(loss_fn(a, o, lab))
        ref = _reference_loss(a, o, lab, CURVATURE, POSITIVE_MARGIN, NEGATIVE_MARGIN)
        assert jnp.allclose(loss, ref, rtol=rtol, atol=atol), (n, d, dt, loss, ref)

    print("KERNEL_OK")
</pallas_src>

<mosaic_0001>
module attributes {stable_mosaic.version = 11 : i64} {
  func.func @_cluster_loss_kernel(%arg0: i32, %arg1: memref<128x4xf32, #tpu.memory_space<vmem>>, %arg2: memref<8x128xf32, #tpu.memory_space<vmem>>, %arg3: memref<8x128xf32, #tpu.memory_space<vmem>>, %arg4: memref<8x4xf32, #tpu.memory_space<vmem>>, %arg5: memref<1x1x1xf32, #tpu.memory_space<vmem>>) attributes {dimension_semantics = [#tpu.dimension_semantics<parallel>], iteration_bounds = array<i64: 2>, scalar_prefetch = 0 : i64, scratch_operands = 0 : i64, tpu.core_type = #tpu.core_type<tc>, window_params = [{pipeline_mode = #tpu.pipeline_mode<synchronous>, transform_indices = @transform_0, window_bounds = array<i64: 128, 4>}, {transform_indices = @transform_1, window_bounds = array<i64: 8, 128>}, {transform_indices = @transform_2, window_bounds = array<i64: 8, 128>}, {transform_indices = @transform_3, window_bounds = array<i64: 8, 4>}, {transform_indices = @transform_4, window_bounds = array<i64: 1, 1, 1>}]} {
    %c0 = arith.constant 0 : index
    %c0_0 = arith.constant 0 : index
    %0 = vector.load %arg2[%c0, %c0_0] : memref<8x128xf32, #tpu.memory_space<vmem>>, vector<8x128xf32>
    %c0_1 = arith.constant 0 : index
    %c0_2 = arith.constant 0 : index
    %1 = vector.load %arg3[%c0_1, %c0_2] : memref<8x128xf32, #tpu.memory_space<vmem>>, vector<8x128xf32>
    %c0_3 = arith.constant 0 : index
    %c0_4 = arith.constant 0 : index
    %2 = vector.load %arg1[%c0_3, %c0_4] : memref<128x4xf32, #tpu.memory_space<vmem>>, vector<128x4xf32>
    %c0_5 = arith.constant 0 : index
    %c0_6 = arith.constant 0 : index
    %3 = vector.load %arg4[%c0_5, %c0_6] : memref<8x4xf32, #tpu.memory_space<vmem>>, vector<8x4xf32>
    %4 = arith.mulf %0, %0 : vector<8x128xf32>
    %5 = arith.mulf %1, %1 : vector<8x128xf32>
    %6 = arith.mulf %0, %1 : vector<8x128xf32>
    %cst = arith.constant dense<0.000000e+00> : vector<8x4xf32>
    %7 = tpu.matmul %4, %2, %cst {dimension_numbers = #tpu.dot_dimension_numbers<[1], [0], [0], [1], [0, 0, 1, 1], [], []>} : vector<8x128xf32>, vector<128x4xf32>, vector<8x4xf32> -> vector<8x4xf32>
    %cst_7 = arith.constant dense<0.000000e+00> : vector<8x4xf32>
    %8 = tpu.matmul %5, %2, %cst_7 {dimension_numbers = #tpu.dot_dimension_numbers<[1], [0], [0], [1], [0, 0, 1, 1], [], []>} : vector<8x128xf32>, vector<128x4xf32>, vector<8x4xf32> -> vector<8x4xf32>
    %cst_8 = arith.constant dense<0.000000e+00> : vector<8x4xf32>
    %9 = tpu.matmul %6, %2, %cst_8 {dimension_numbers = #tpu.dot_dimension_numbers<[1], [0], [0], [1], [0, 0, 1, 1], [], []>} : vector<8x128xf32>, vector<128x4xf32>, vector<8x4xf32> -> vector<8x4xf32>
    %cst_9 = arith.constant -2.000000e+00 : f32
    %10 = vector.broadcast %cst_9 : f32 to vector<8x4xf32>
    %11 = arith.mulf %10, %9 : vector<8x4xf32>
    %cst_10 = arith.constant 1.000000e+00 : f32
    %12 = vector.broadcast %cst_10 : f32 to vector<8x4xf32>
    %13 = arith.addf %12, %11 : vector<8x4xf32>
    %cst_11 = arith.constant 1.000000e+00 : f32
    %14 = vector.broadcast %cst_11 : f32 to vector<8x4xf32>
    %15 = arith.mulf %14, %8 : vector<8x4xf32>
    %16 = arith.addf %13, %15 : vector<8x4xf32>
    %cst_12 = arith.constant 1.000000e+00 : f32
    %17 = vector.broadcast %cst_12 : f32 to vector<8x4xf32>
    %18 = arith.mulf %17, %7 : vector<8x4xf32>
    %cst_13 = arith.constant 1.000000e+00 : f32
    %19 = vector.broadcast %cst_13 : f32 to vector<8x4xf32>
    %20 = arith.subf %19, %18 : vector<8x4xf32>
    %cst_14 = arith.constant 1.000000e+00 : f32
    %21 = vector.broadcast %cst_14 : f32 to vector<8x4xf32>
    %22 = arith.addf %21, %11 : vector<8x4xf32>
    %cst_15 = arith.constant 1.000000e+00 : f32
    %23 = vector.broadcast %cst_15 : f32 to vector<8x4xf32>
    %24 = arith.mulf %23, %7 : vector<8x4xf32>
    %25 = arith.mulf %24, %8 : vector<8x4xf32>
    %26 = arith.addf %22, %25 : vector<8x4xf32>
    %cst_16 = arith.constant 1.000000e-15 : f32
    %27 = vector.broadcast %cst_16 : f32 to vector<8x4xf32>
    %28 = arith.maximumf %26, %27 : vector<8x4xf32>
    %29 = arith.mulf %16, %16 : vector<8x4xf32>
    %30 = arith.mulf %29, %7 : vector<8x4xf32>
    %cst_17 = arith.constant 2.000000e+00 : f32
    %31 = vector.broadcast %cst_17 : f32 to vector<8x4xf32>
    %32 = arith.mulf %31, %16 : vector<8x4xf32>
    %33 = arith.mulf %32, %20 : vector<8x4xf32>
    %34 = arith.mulf %33, %9 : vector<8x4xf32>
    %35 = arith.subf %30, %34 : vector<8x4xf32>
    %36 = arith.mulf %20, %20 : vector<8x4xf32>
    %37 = arith.mulf %36, %8 : vector<8x4xf32>
    %38 = arith.addf %35, %37 : vector<8x4xf32>
    %39 = tpu.reciprocal %28 : vector<8x4xf32> -> vector<8x4xf32>
    %cst_18 = arith.constant 1.000000e-15 : f32
    %40 = vector.broadcast %cst_18 : f32 to vector<8x4xf32>
    %41 = arith.maximumf %38, %40 : vector<8x4xf32>
    %42 = math.sqrt %41 : vector<8x4xf32>
    %43 = arith.mulf %42, %39 : vector<8x4xf32>
    %cst_19 = arith.constant 1.000000e+00 : f32
    %44 = vector.broadcast %cst_19 : f32 to vector<8x4xf32>
    %45 = arith.mulf %44, %43 : vector<8x4xf32>
    %cst_20 = arith.constant 0.000000e+00 : f32
    %cst_21 = arith.constant 0.999998986 : f32
    %46 = vector.broadcast %cst_20 : f32 to vector<8x4xf32>
    %47 = arith.maximumf %46, %45 : vector<8x4xf32>
    %48 = vector.broadcast %cst_21 : f32 to vector<8x4xf32>
    %49 = arith.minimumf %48, %47 : vector<8x4xf32>
    %cst_22 = arith.constant 1.000000e+00 : f32
    %50 = vector.broadcast %cst_22 : f32 to vector<8x4xf32>
    %51 = arith.addf %50, %49 : vector<8x4xf32>
    %cst_23 = arith.constant 1.000000e+00 : f32
    %52 = vector.broadcast %cst_23 : f32 to vector<8x4xf32>
    %53 = arith.subf %52, %49 : vector<8x4xf32>
    %54 = tpu.reciprocal %53 : vector<8x4xf32> -> vector<8x4xf32>
    %55 = arith.mulf %51, %54 : vector<8x4xf32>
    %56 = math.log %55 : vector<8x4xf32>
    %cst_24 = arith.constant 1.000000e+00 : f32
    %57 = vector.broadcast %cst_24 : f32 to vector<8x4xf32>
    %58 = arith.mulf %57, %56 : vector<8x4xf32>
    %cst_25 = arith.constant 1.000000e+00 : f32
    %59 = vector.broadcast %cst_25 : f32 to vector<8x4xf32>
    %60 = arith.subf %58, %59 : vector<8x4xf32>
    %cst_26 = arith.constant 0.000000e+00 : f32
    %61 = vector.broadcast %cst_26 : f32 to vector<8x4xf32>
    %62 = arith.maximumf %60, %61 : vector<8x4xf32>
    %63 = arith.mulf %3, %62 : vector<8x4xf32>
    %cst_27 = arith.constant 1.000000e+00 : f32
    %64 = vector.broadcast %cst_27 : f32 to vector<8x4xf32>
    %65 = arith.subf %64, %3 : vector<8x4xf32>
    %cst_28 = arith.constant 3.000000e+00 : f32
    %66 = vector.broadcast %cst_28 : f32 to vector<8x4xf32>
    %67 = arith.subf %66, %58 : vector<8x4xf32>
    %cst_29 = arith.constant 0.000000e+00 : f32
    %68 = vector.broadcast %cst_29 : f32 to vector<8x4xf32>
    %69 = arith.maximumf %67, %68 : vector<8x4xf32>
    %70 = arith.mulf %65, %69 : vector<8x4xf32>
    %c8_i32 = arith.constant 8 : i32
    %71 = arith.muli %arg0, %c8_i32 : i32
    %72 = tpu.iota {dimensions = array<i32: 0>} : vector<8x4xi32>
    %73 = vector.broadcast %71 : i32 to vector<8x4xi32>
    %74 = arith.addi %73, %72 : vector<8x4xi32>
    %c4_i32 = arith.constant 4 : i32
    %75 = vector.broadcast %c4_i32 : i32 to vector<8x4xi32>
    %76 = arith.muli %74, %75 : vector<8x4xi32>
    %77 = tpu.iota {dimensions = array<i32: 1>} : vector<8x4xi32>
    %78 = arith.addi %76, %77 : vector<8x4xi32>
    %c64_i32 = arith.constant 64 : i32
    %79 = vector.broadcast %c64_i32 : i32 to vector<8x4xi32>
    %80 = arith.cmpi slt, %78, %79 : vector<8x4xi32>
    %81 = arith.addf %63, %70 : vector<8x4xf32>
    %cst_30 = arith.constant 0.000000e+00 : f32
    %82 = vector.broadcast %cst_30 : f32 to vector<8x4xf32>
    %83 = arith.select %80, %81, %82 : vector<8x4xi1>, vector<8x4xf32>
    %84 = vector.shape_cast %83 : vector<8x4xf32> to vector<1x8x4xf32>
    %cst_31 = arith.constant dense<0.000000e+00> : vector<1xf32>
    %85 = vector.multi_reduction <add>, %84, %cst_31 [1, 2] : vector<1x8x4xf32> to vector<1xf32>
    %86 = vector.shape_cast %85 : vector<1xf32> to vector<1x1x1xf32>
    %87 = vector.extract %86[0, 0, 0] : f32 from vector<1x1x1xf32>
    %88 = vector.broadcast %87 : f32 to vector<1x1xf32>
    %89 = vector.shape_cast %88 : vector<1x1xf32> to vector<1x1x1xf32>
    %c0_32 = arith.constant 0 : index
    %c0_33 = arith.constant 0 : index
    %c0_34 = arith.constant 0 : index
    %90 = vector.load %arg5[%c0_32, %c0_33, %c0_34] : memref<1x1x1xf32, #tpu.memory_space<vmem>>, vector<1x1x1xf32>
    tpu.vector_store %arg5[%c0_32, %c0_33, %c0_34], %89 {strides = array<i32>} : memref<1x1x1xf32, #tpu.memory_space<vmem>>, vector<1x1x1xf32>,
    return
  }
  func.func @transform_0(%arg0: i32) -> (i32, i32) {
    %c0_i32 = arith.constant 0 : i32
    %c0_i32_0 = arith.constant 0 : i32
    %c0_i32_1 = arith.constant 0 : i32
    return %c0_i32, %c0_i32_0 : i32, i32
  }
  func.func @transform_1(%arg0: i32) -> (i32, i32) {
    %c0_i32 = arith.constant 0 : i32
    %c0_i32_0 = arith.constant 0 : i32
    return %arg0, %c0_i32 : i32, i32
  }
  func.func @transform_2(%arg0: i32) -> (i32, i32) {
    %c0_i32 = arith.constant 0 : i32
    %c0_i32_0 = arith.constant 0 : i32
    return %arg0, %c0_i32 : i32, i32
  }
  func.func @transform_3(%arg0: i32) -> (i32, i32) {
    %c0_i32 = arith.constant 0 : i32
    %c0_i32_0 = arith.constant 0 : i32
    return %arg0, %c0_i32 : i32, i32
  }
  func.func @transform_4(%arg0: i32) -> (i32, i32, i32) {
    %c0_i32 = arith.constant 0 : i32
    %c0_i32_0 = arith.constant 0 : i32
    %c0_i32_1 = arith.constant 0 : i32
    return %arg0, %c0_i32, %c0_i32_0 : i32, i32, i32
  }
}

</mosaic_0001>

<llo_original>
// kernel: clustering_contrastive_loss.1
$region0: #{clustering_contrastive_loss.1}
  #allocation0 [shape = 'u32[]', space=smem, size = 0x4, offset = 0x4, fixed_abs, tag = 'smem constant byte address 0x4 - core index']
  #allocation1 [shape = 'u32[144,128]{1,0:T(1,128)}', space=vmem, size = 0x12000, scoped, tag = 'internal scratch']
  %s0 = inlined_call_operand.vmem [shape: f32[128,4], index: 0, kind: input, shape index: {}]
  %s1 = inlined_call_operand.vmem [shape: f32[16,128], index: 1, kind: input, shape index: {}]
  %s2 = inlined_call_operand.vmem [shape: f32[16,128], index: 2, kind: input, shape index: {}]
  %s3 = inlined_call_operand.vmem [shape: f32[16,4], index: 3, kind: input, shape index: {}]
  %s4 = inlined_call_operand.vmem [shape: f32[2,1,1], index: 4, kind: output, shape index: {}]
  %s5 = sld [smem:[#allocation0]]
  $region49: #{clustering_contrastive_loss.1} parent=0
    _
  %s7 = ssub.s32 1, %s5
  %s8 = scalar_select 0, %s7, %s5
  loop: start=0, step=1, limit=4
  $region2: #{clustering_contrastive_loss.1} parent=0 // loop_pre_header
    _
  $region3: #{clustering_contrastive_loss.1} parent=0 // loop_header
    %s10 = sphi 0, %s14
    %p11 = scmp.ge.s32.totalorder %s10, 4
    %s18 = sphi 0, %s18
    %s20 = sphi 0, %s18
    %s21 = sphi 0, %s20
    %s35 = sphi 0, %s21
    %s41 = sphi 0, %s43
    %s44 = sphi 0, %s41
    %s45 = sphi 0, %s44
    %s61 = sphi 0, %s45
    %s67 = sphi 0, %s69
    %s70 = sphi 0, %s67
    %s71 = sphi 0, %s70
    %s87 = sphi 0, %s71
    %s93 = sphi 0, %s95
    %s96 = sphi 0, %s93
    %s97 = sphi 0, %s96
    %s113 = sphi 0, %s97
    %s119 = sphi 0, %s121
    %s122 = sphi 0, %s119
    %s123 = sphi 0, %s122
    %s139 = sphi 0, %s123
  $region4: #{clustering_contrastive_loss.1} parent=0 // loop_header_branch
    %13 = sbr.rel (%p11) target = $region8
  $region5: #{clustering_contrastive_loss.1} parent=0 // loop_body
    %s15 = ssub.s32 %s10, 1
    %s16 = ssub.s32 %s10, 2
    %s17 = sadd.s32 %s10, 1
    %s19 = sadd.s32 %s18, 1
    %p22 = scmp.eq.s32.totalorder %s10, 1
    %p23 = scmp.ne.s32.totalorder %s18, %s20
    %p24 = scmp.eq.s32.totalorder %s10, 0
    %p25 = por %p23, %p24
    %p26 = scmp.ne.s32.totalorder %s18, %s20
    %p27 = scmp.eq.s32.totalorder %s15, 1
    %p28 = por %p26, %p27
    %p29 = scmp.ne.s32.totalorder %s20, %s21
    %p30 = scmp.eq.s32.totalorder %s15, 0
    %p31 = por %p29, %p30
    %p32 = scmp.ne.s32.totalorder %s20, %s21
    %p33 = scmp.eq.s32.totalorder %s16, 1
    %p34 = por %p32, %p33
    %p36 = scmp.ne.s32.totalorder %s21, %s35
    %p37 = scmp.eq.s32.totalorder %s16, 0
    %p38 = por %p36, %p37
    %s39 = ssub.s32 %s10, %s17
    %p40 = scmp.eq.s32.totalorder %s39, 0
    %s42 = sadd.s32 %s41, 1
    %s43 = scalar_select %p40, %s41, %s42
    %p46 = pneg %p40
    %p47 = scmp.eq.s32.totalorder %s10, 1
    %p48 = por %p46, %p47
    %p49 = scmp.ne.s32.totalorder %s41, %s44
    %p50 = scmp.eq.s32.totalorder %s10, 0
    %p51 = por %p49, %p50
    %p52 = scmp.ne.s32.totalorder %s41, %s44
    %p53 = scmp.eq.s32.totalorder %s15, 1
    %p54 = por %p52, %p53
    %p55 = scmp.ne.s32.totalorder %s44, %s45
    %p56 = scmp.eq.s32.totalorder %s15, 0
    %p57 = por %p55, %p56
    %p58 = scmp.ne.s32.totalorder %s44, %s45
    %p59 = scmp.eq.s32.totalorder %s16, 1
    %p60 = por %p58, %p59
    %p62 = scmp.ne.s32.totalorder %s45, %s61
    %p63 = scmp.eq.s32.totalorder %s16, 0
    %p64 = por %p62, %p63
    %s65 = ssub.s32 %s10, %s17
    %p66 = scmp.eq.s32.totalorder %s65, 0
    %s68 = sadd.s32 %s67, 1
    %s69 = scalar_select %p66, %s67, %s68
    %p72 = pneg %p66
    %p73 = scmp.eq.s32.totalorder %s10, 1
    %p74 = por %p72, %p73
    %p75 = scmp.ne.s32.totalorder %s67, %s70
    %p76 = scmp.eq.s32.totalorder %s10, 0
    %p77 = por %p75, %p76
    %p78 = scmp.ne.s32.totalorder %s67, %s70
    %p79 = scmp.eq.s32.totalorder %s15, 1
    %p80 = por %p78, %p79
    %p81 = scmp.ne.s32.totalorder %s70, %s71
    %p82 = scmp.eq.s32.totalorder %s15, 0
    %p83 = por %p81, %p82
    %p84 = scmp.ne.s32.totalorder %s70, %s71
    %p85 = scmp.eq.s32.totalorder %s16, 1
    %p86 = por %p84, %p85
    %p88 = scmp.ne.s32.totalorder %s71, %s87
    %p89 = scmp.eq.s32.totalorder %s16, 0
    %p90 = por %p88, %p89
    %s91 = ssub.s32 %s10, %s17
    %p92 = scmp.eq.s32.totalorder %s91, 0
    %s94 = sadd.s32 %s93, 1
    %s95 = scalar_select %p92, %s93, %s94
    %p98 = pneg %p92
    %p99 = scmp.eq.s32.totalorder %s10, 1
    %p100 = por %p98, %p99
    %p101 = scmp.ne.s32.totalorder %s93, %s96
    %p102 = scmp.eq.s32.totalorder %s10, 0
    %p103 = por %p101, %p102
    %p104 = scmp.ne.s32.totalorder %s93, %s96
    %p105 = scmp.eq.s32.totalorder %s15, 1
    %p106 = por %p104, %p105
    %p107 = scmp.ne.s32.totalorder %s96, %s97
    %p108 = scmp.eq.s32.totalorder %s15, 0
    %p109 = por %p107, %p108
    %p110 = scmp.ne.s32.totalorder %s96, %s97
    %p111 = scmp.eq.s32.totalorder %s16, 1
    %p112 = por %p110, %p111
    %p114 = scmp.ne.s32.totalorder %s97, %s113
    %p115 = scmp.eq.s32.totalorder %s16, 0
    %p116 = por %p114, %p115
    %s117 = ssub.s32 %s10, %s17
    %p118 = scmp.eq.s32.totalorder %s117, 0
    %s120 = sadd.s32 %s119, 1
    %s121 = scalar_select %p118, %s119, %s120
    %p124 = pneg %p118
    %p125 = scmp.eq.s32.totalorder %s10, 1
    %p126 = por %p124, %p125
    %p127 = scmp.ne.s32.totalorder %s119, %s122
    %p128 = scmp.eq.s32.totalorder %s10, 0
    %p129 = por %p127, %p128
    %p130 = scmp.ne.s32.totalorder %s119, %s122
    %p131 = scmp.eq.s32.totalorder %s15, 1
    %p132 = por %p130, %p131
    %p133 = scmp.ne.s32.totalorder %s122, %s123
    %p134 = scmp.eq.s32.totalorder %s15, 0
    %p135 = por %p133, %p134
    %p136 = scmp.ne.s32.totalorder %s122, %s123
    %p137 = scmp.eq.s32.totalorder %s16, 1
    %p138 = por %p136, %p137
    %p140 = scmp.ne.s32.totalorder %s123, %s139
    %p141 = scmp.eq.s32.totalorder %s16, 0
    %p142 = por %p140, %p141
    %p143 = scmp.le.s32.totalorder 1, %s10
    %p144 = scmp.lt.s32.totalorder %s10, 3
    %p145 = pnand %p143, %p144
    %p146 = pneg %p145
    // Predicated region
    $region9: #{clustering_contrastive_loss.1} parent=5 // pred_check
      _
    $region10: #{clustering_contrastive_loss.1} parent=5 // pred_check_branch
      %148 = sbr.rel (%p145) target = $region12
    $region11: #{clustering_contrastive_loss.1} parent=5 // pred_region
      %s149 = ssub.s32 %s10, 1
      // Predicated region
      $region13: #{clustering_contrastive_loss.1} parent=11 // pred_check
        %p150 = pneg %p31
      $region14: #{clustering_contrastive_loss.1} parent=11 // pred_check_branch
        %152 = sbr.rel (%p150) target = $region16
      $region15: #{clustering_contrastive_loss.1} parent=11 // pred_region
        _
      $region16: #{clustering_contrastive_loss.1} parent=11 // pred_fallthru
        _
    $region12: #{clustering_contrastive_loss.1} parent=5 // pred_fallthru
      _
    %p153 = scmp.lt.s32.totalorder %s10, 2
    // Predicated region
    $region17: #{clustering_contrastive_loss.1} parent=5 // pred_check
      %p154 = pneg %p153
    $region18: #{clustering_contrastive_loss.1} parent=5 // pred_check_branch
      %156 = sbr.rel (%p154) target = $region20
    $region19: #{clustering_contrastive_loss.1} parent=5 // pred_region
      // Predicated region
      $region21: #{clustering_contrastive_loss.1} parent=19 // pred_check
        %p157 = pneg %p51
      $region22: #{clustering_contrastive_loss.1} parent=19 // pred_check_branch
        %159 = sbr.rel (%p157) target = $region24
      $region23: #{clustering_contrastive_loss.1} parent=19 // pred_region
        %p160 = scmp.lt.s32.totalorder %s10, 1
        %s161 = scalar_select %p160, %s10, 1
        %s162 = smul.addr %s161, 8
        %s163 = scalar_lea.vmem %s1, %s162
      $region24: #{clustering_contrastive_loss.1} parent=19 // pred_fallthru
        _
      // Predicated region
      $region25: #{clustering_contrastive_loss.1} parent=19 // pred_check
        %p164 = pneg %p77
      $region26: #{clustering_contrastive_loss.1} parent=19 // pred_check_branch
        %166 = sbr.rel (%p164) target = $region28
      $region27: #{clustering_contrastive_loss.1} parent=19 // pred_region
        %p167 = scmp.lt.s32.totalorder %s10, 1
        %s168 = scalar_select %p167, %s10, 1
        %s169 = smul.addr %s168, 8
        %s170 = scalar_lea.vmem %s2, %s169
      $region28: #{clustering_contrastive_loss.1} parent=19 // pred_fallthru
        _
      // Predicated region
      $region29: #{clustering_contrastive_loss.1} parent=19 // pred_check
        %p171 = pneg %p103
      $region30: #{clustering_contrastive_loss.1} parent=19 // pred_check_branch
        %173 = sbr.rel (%p171) target = $region32
      $region31: #{clustering_contrastive_loss.1} parent=19 // pred_region
        %p174 = scmp.lt.s32.totalorder %s10, 1
        %s175 = scalar_select %p174, %s10, 1
        %s176 = smul.addr %s175, 8
        %s177 = scalar_lea.vmem %s3, %s176
      $region32: #{clustering_contrastive_loss.1} parent=19 // pred_fallthru
        _
    $region20: #{clustering_contrastive_loss.1} parent=5 // pred_fallthru
      _
    %p178 = scmp.le.s32.totalorder 1, %s10
    %p179 = scmp.lt.s32.totalorder %s10, 3
    %p180 = pnand %p178, %p179
    %p181 = pneg %p180
    // Predicated region
    $region33: #{clustering_contrastive_loss.1} parent=5 // pred_check
      _
    $region34: #{clustering_contrastive_loss.1} parent=5 // pred_check_branch
      %183 = sbr.rel (%p180) target = $region36
    $region35: #{clustering_contrastive_loss.1} parent=5 // pred_region
      %s184 = ssub.s32 %s10, 1
      %p185 = pneg %p31
      %p186 = pneg %p28
      %p187 = scmp.lt.s32.totalorder %s15, 1
      %s188 = scalar_select %p187, %s15, 1
      %s189 = smul.addr %s188, 8
      %s190 = scalar_lea.vmem %s1, %s189
      %p191 = pneg %p57
      %p192 = pneg %p54
      %p193 = scmp.lt.s32.totalorder %s15, 1
      %s194 = scalar_select %p193, %s15, 1
      %s195 = smul.addr %s194, 8
      %s196 = scalar_lea.vmem %s2, %s195
      %p197 = pneg %p83
      %p198 = pneg %p80
      %p199 = scmp.lt.s32.totalorder %s15, 1
      %s200 = scalar_select %p199, %s15, 1
      %s201 = smul.addr %s200, 8
      %s202 = scalar_lea.vmem %s3, %s201
      %p203 = pneg %p109
      %p204 = pneg %p106
      %p205 = pneg %p135
      %p206 = pneg %p132
      %p207 = scmp.lt.s32.totalorder %s15, 1
      %s208 = scalar_select %p207, %s15, 1
      %s209 = scalar_lea.vmem %s4, %s208
      %p210 = scmp.lt.s32.totalorder %s15, 1
      %s211 = scalar_select %p210, %s15, 1
      %s212 = smul.addr %s211, 8
      %s213 = scalar_lea.vmem %s1, %s212
      %p214 = scmp.lt.s32.totalorder %s15, 1
      %s215 = scalar_select %p214, %s15, 1
      %s216 = smul.addr %s215, 8
      %s217 = scalar_lea.vmem %s2, %s216
      %p218 = scmp.lt.s32.totalorder %s15, 1
      %s219 = scalar_select %p218, %s15, 1
      %s220 = smul.addr %s219, 8
      %s221 = scalar_lea.vmem %s3, %s220
      %p222 = scmp.lt.s32.totalorder %s15, 1
      %s223 = scalar_select %p222, %s15, 1
      %s224 = scalar_lea.vmem %s4, %s223
      %v225 = vld [vmem:[%s213] sm:$0xff]
      %v226 = vld [vmem:[%s217] sm:$0xff]
      %v227 = vld [vmem:[%s0] sm:$0xff]
      %v228 = vld [vmem:[%s0 + $0x8] sm:$0xff]
      %v229 = vld [vmem:[%s0 + $0x10] sm:$0xff]
      %v230 = vld [vmem:[%s0 + $0x18] sm:$0xff]
      %v231 = vld [vmem:[%s0 + $0x20] sm:$0xff]
      %v232 = vld [vmem:[%s0 + $0x28] sm:$0xff]
      %v233 = vld [vmem:[%s0 + $0x30] sm:$0xff]
      %v234 = vld [vmem:[%s0 + $0x38] sm:$0xff]
      %v235 = vld [vmem:[%s0 + $0x40] sm:$0xff]
      %v236 = vld [vmem:[%s0 + $0x48] sm:$0xff]
      %v237 = vld [vmem:[%s0 + $0x50] sm:$0xff]
      %v238 = vld [vmem:[%s0 + $0x58] sm:$0xff]
      %v239 = vld [vmem:[%s0 + $0x60] sm:$0xff]
      %v240 = vld [vmem:[%s0 + $0x68] sm:$0xff]
      %v241 = vld [vmem:[%s0 + $0x70] sm:$0xff]
      %v242 = vld [vmem:[%s0 + $0x78] sm:$0xff]
      %v243 = vld [vmem:[%s221] sm:$0xff]
      %v244 = vmul.f32 %v225, %v225
      %v245 = vmul.f32 %v226, %v226
      %v246 = vmul.f32 %v225, %v226
      %247 = vmatprep.subr.mxu0 0.0
      %248 = vmatpush1.msra.mxu0 %v227
      %249 = vmatprep.subr.mxu0 0.0
      %250 = vmatpush1.msra.mxu0 %v228
      %251 = vmatprep.subr.mxu0 0.0
      %252 = vmatpush1.msra.mxu0 %v229
      %253 = vmatprep.subr.mxu0 0.0
      %254 = vmatpush1.msra.mxu0 %v230
      %255 = vmatprep.subr.mxu0 0.0
      %256 = vmatpush1.msra.mxu0 %v231
      %257 = vmatprep.subr.mxu0 0.0
      %258 = vmatpush1.msra.mxu0 %v232
      %259 = vmatprep.subr.mxu0 0.0
      %260 = vmatpush1.msra.mxu0 %v233
      %261 = vmatprep.subr.mxu0 0.0
      %262 = vmatpush1.msra.mxu0 %v234
      %263 = vmatprep.subr.mxu0 0.0
      %264 = vmatpush1.msra.mxu0 %v235
      %265 = vmatprep.subr.mxu0 0.0
      %266 = vmatpush1.msra.mxu0 %v236
      %267 = vmatprep.subr.mxu0 0.0
      %268 = vmatpush1.msra.mxu0 %v237
      %269 = vmatprep.subr.mxu0 0.0
      %270 = vmatpush1.msra.mxu0 %v238
      %271 = vmatprep.subr.mxu0 0.0
      %272 = vmatpush1.msra.mxu0 %v239
      %273 = vmatprep.subr.mxu0 0.0
      %274 = vmatpush1.msra.mxu0 %v240
      %275 = vmatprep.subr.mxu0 0.0
      %276 = vmatpush1.msra.mxu0 %v241
      %277 = vmatprep.subr.mxu0 0.0
      %278 = vmatpush1.msra.mxu0 %v242
      %279 = vmatprep.subr.mxu0 0.0
      %280 = vmatpush1.msra.mxu0 0.0
      %281 = vmatprep.subr.mxu0 0.0
      %282 = vmatpush1.msra.mxu0 0.0
      %283 = vmatprep.subr.mxu0 0.0
      %284 = vmatpush1.msra.mxu0 0.0
      %285 = vmatprep.subr.mxu0 0.0
      %286 = vmatpush1.msra.mxu0 0.0
      %287 = vmatprep.subr.mxu0 0.0
      %288 = vmatpush1.msra.mxu0 0.0
      %289 = vmatprep.subr.mxu0 0.0
      %290 = vmatpush1.msra.mxu0 0.0
      %291 = vmatprep.subr.mxu0 0.0
      %292 = vmatpush1.msra.mxu0 0.0
      %293 = vmatprep.subr.mxu0 0.0
      %294 = vmatpush1.msra.mxu0 0.0
      %295 = vmatprep.subr.mxu0 0.0
      %296 = vmatpush1.msra.mxu0 0.0
      %297 = vmatprep.subr.mxu0 0.0
      %298 = vmatpush1.msra.mxu0 0.0
      %299 = vmatprep.subr.mxu0 0.0
      %300 = vmatpush1.msra.mxu0 0.0
      %301 = vmatprep.subr.mxu0 0.0
      %302 = vmatpush1.msra.mxu0 0.0
      %303 = vmatprep.subr.mxu0 0.0
      %304 = vmatpush1.msra.mxu0 0.0
      %305 = vmatprep.subr.mxu0 0.0
      %306 = vmatpush1.msra.mxu0 0.0
      %307 = vmatprep.subr.mxu0 0.0
      %308 = vmatpush1.msra.mxu0 0.0
      %309 = vmatprep.subr.mxu0 0.0
      %310 = vmatpush1.msra.mxu0 0.0
      %311 = vmatprep.mubr.f32.mxu0 0.0
      %312 = vmatmul.mubr.f32.gmra.mrb[0].mxu0 %v244
      %v313 = vpop.f32.mrb[0].mxu0
      %v314 = vadd.f32 0.0, %v313
      %v315 = vpop.f32.mrb[0].mxu0
      %316 = vdwg.mxu0
      %317 = vmatprep.subr.mxu0 0.0
      %318 = vmatpush1.msra.mxu0 %v227
      %319 = vmatprep.subr.mxu0 0.0
      %320 = vmatpush1.msra.mxu0 %v228
      %321 = vmatprep.subr.mxu0 0.0
      %322 = vmatpush1.msra.mxu0 %v229
      %323 = vmatprep.subr.mxu0 0.0
      %324 = vmatpush1.msra.mxu0 %v230
      %325 = vmatprep.subr.mxu0 0.0
      %326 = vmatpush1.msra.mxu0 %v231
      %327 = vmatprep.subr.mxu0 0.0
      %328 = vmatpush1.msra.mxu0 %v232
      %329 = vmatprep.subr.mxu0 0.0
      %330 = vmatpush1.msra.mxu0 %v233
      %331 = vmatprep.subr.mxu0 0.0
      %332 = vmatpush1.msra.mxu0 %v234
      %333 = vmatprep.subr.mxu0 0.0
      %334 = vmatpush1.msra.mxu0 %v235
      %335 = vmatprep.subr.mxu0 0.0
      %336 = vmatpush1.msra.mxu0 %v236
      %337 = vmatprep.subr.mxu0 0.0
      %338 = vmatpush1.msra.mxu0 %v237
      %339 = vmatprep.subr.mxu0 0.0
      %340 = vmatpush1.msra.mxu0 %v238
      %341 = vmatprep.subr.mxu0 0.0
      %342 = vmatpush1.msra.mxu0 %v239
      %343 = vmatprep.subr.mxu0 0.0
      %344 = vmatpush1.msra.mxu0 %v240
      %345 = vmatprep.subr.mxu0 0.0
      %346 = vmatpush1.msra.mxu0 %v241
      %347 = vmatprep.subr.mxu0 0.0
      %348 = vmatpush1.msra.mxu0 %v242
      %349 = vmatprep.subr.mxu0 0.0
      %350 = vmatpush1.msra.mxu0 0.0
      %351 = vmatprep.subr.mxu0 0.0
      %352 = vmatpush1.msra.mxu0 0.0
      %353 = vmatprep.subr.mxu0 0.0
      %354 = vmatpush1.msra.mxu0 0.0
      %355 = vmatprep.subr.mxu0 0.0
      %356 = vmatpush1.msra.mxu0 0.0
      %357 = vmatprep.subr.mxu0 0.0
      %358 = vmatpush1.msra.mxu0 0.0
      %359 = vmatprep.subr.mxu0 0.0
      %360 = vmatpush1.msra.mxu0 0.0
      %361 = vmatprep.subr.mxu0 0.0
      %362 = vmatpush1.msra.mxu0 0.0
      %363 = vmatprep.subr.mxu0 0.0
      %364 = vmatpush1.msra.mxu0 0.0
      %365 = vmatprep.subr.mxu0 0.0
      %366 = vmatpush1.msra.mxu0 0.0
      %367 = vmatprep.subr.mxu0 0.0
      %368 = vmatpush1.msra.mxu0 0.0
      %369 = vmatprep.subr.mxu0 0.0
      %370 = vmatpush1.msra.mxu0 0.0
      %371 = vmatprep.subr.mxu0 0.0
      %372 = vmatpush1.msra.mxu0 0.0
      %373 = vmatprep.subr.mxu0 0.0
      %374 = vmatpush1.msra.mxu0 0.0
      %375 = vmatprep.subr.mxu0 0.0
      %376 = vmatpush1.msra.mxu0 0.0
      %377 = vmatprep.subr.mxu0 0.0
      %378 = vmatpush1.msra.mxu0 0.0
      %379 = vmatprep.subr.mxu0 0.0
      %380 = vmatpush1.msra.mxu0 0.0
      %381 = vmatprep.mubr.f32.mxu0 0.0
      %382 = vmatmul.mubr.f32.gmra.mrb[0].mxu0 %v245
      %v383 = vpop.f32.mrb[0].mxu0
      %v384 = vadd.f32 0.0, %v383
      %v385 = vpop.f32.mrb[0].mxu0
      %386 = vdwg.mxu0
      %387 = vmatprep.subr.mxu0 0.0
      %388 = vmatpush1.msra.mxu0 %v227
      %389 = vmatprep.subr.mxu0 0.0
      %390 = vmatpush1.msra.mxu0 %v228
      %391 = vmatprep.subr.mxu0 0.0
      %392 = vmatpush1.msra.mxu0 %v229
      %393 = vmatprep.subr.mxu0 0.0
      %394 = vmatpush1.msra.mxu0 %v230
      %395 = vmatprep.subr.mxu0 0.0
      %396 = vmatpush1.msra.mxu0 %v231
      %397 = vmatprep.subr.mxu0 0.0
      %398 = vmatpush1.msra.mxu0 %v232
      %399 = vmatprep.subr.mxu0 0.0
      %400 = vmatpush1.msra.mxu0 %v233
      %401 = vmatprep.subr.mxu0 0.0
      %402 = vmatpush1.msra.mxu0 %v234
      %403 = vmatprep.subr.mxu0 0.0
      %404 = vmatpush1.msra.mxu0 %v235
      %405 = vmatprep.subr.mxu0 0.0
      %406 = vmatpush1.msra.mxu0 %v236
      %407 = vmatprep.subr.mxu0 0.0
      %408 = vmatpush1.msra.mxu0 %v237
      %409 = vmatprep.subr.mxu0 0.0
      %410 = vmatpush1.msra.mxu0 %v238
      %411 = vmatprep.subr.mxu0 0.0
      %412 = vmatpush1.msra.mxu0 %v239
      %413 = vmatprep.subr.mxu0 0.0
      %414 = vmatpush1.msra.mxu0 %v240
      %415 = vmatprep.subr.mxu0 0.0
      %416 = vmatpush1.msra.mxu0 %v241
      %417 = vmatprep.subr.mxu0 0.0
      %418 = vmatpush1.msra.mxu0 %v242
      %419 = vmatprep.subr.mxu0 0.0
      %420 = vmatpush1.msra.mxu0 0.0
      %421 = vmatprep.subr.mxu0 0.0
      %422 = vmatpush1.msra.mxu0 0.0
      %423 = vmatprep.subr.mxu0 0.0
      %424 = vmatpush1.msra.mxu0 0.0
      %425 = vmatprep.subr.mxu0 0.0
      %426 = vmatpush1.msra.mxu0 0.0
      %427 = vmatprep.subr.mxu0 0.0
      %428 = vmatpush1.msra.mxu0 0.0
      %429 = vmatprep.subr.mxu0 0.0
      %430 = vmatpush1.msra.mxu0 0.0
      %431 = vmatprep.subr.mxu0 0.0
      %432 = vmatpush1.msra.mxu0 0.0
      %433 = vmatprep.subr.mxu0 0.0
      %434 = vmatpush1.msra.mxu0 0.0
      %435 = vmatprep.subr.mxu0 0.0
      %436 = vmatpush1.msra.mxu0 0.0
      %437 = vmatprep.subr.mxu0 0.0
      %438 = vmatpush1.msra.mxu0 0.0
      %439 = vmatprep.subr.mxu0 0.0
      %440 = vmatpush1.msra.mxu0 0.0
      %441 = vmatprep.subr.mxu0 0.0
      %442 = vmatpush1.msra.mxu0 0.0
      %443 = vmatprep.subr.mxu0 0.0
      %444 = vmatpush1.msra.mxu0 0.0
      %445 = vmatprep.subr.mxu0 0.0
      %446 = vmatpush1.msra.mxu0 0.0
      %447 = vmatprep.subr.mxu0 0.0
      %448 = vmatpush1.msra.mxu0 0.0
      %449 = vmatprep.subr.mxu0 0.0
      %450 = vmatpush1.msra.mxu0 0.0
      %451 = vmatprep.mubr.f32.mxu0 0.0
      %452 = vmatmul.mubr.f32.gmra.mrb[0].mxu0 %v246
      %v453 = vpop.f32.mrb[0].mxu0
      %v454 = vadd.f32 0.0, %v453
      %v455 = vpop.f32.mrb[0].mxu0
      %456 = vdwg.mxu0
      %v457 = vmul.f32 %v454, -2.0
      %v458 = vadd.f32 %v457, 1.0
      %v459 = vadd.f32 %v458, %v384
      %v460 = vsub.f32 1.0, %v314
      %v461 = vmul.f32 %v314, %v384
      %v462 = vadd.f32 %v458, %v461
      %v463 = vmax.f32 %v462, 1e-15
      %v464 = vmul.f32 %v459, %v459
      %v465 = vmul.f32 %v464, %v314
      %v466 = vmul.f32 %v459, 2.0
      %v467 = vmul.f32 %v466, %v460
      %v468 = vmul.f32 %v467, %v454
      %v469 = vsub.f32 %v465, %v468
      %v470 = vmul.f32 %v460, %v460
      %v471 = vmul.f32 %v470, %v384
      %v472 = vadd.f32 %v469, %v471
      %v473 = vrcp.pop %v463
      %v474 = vmax.f32 %v472, 1e-15
      %v475 = vrsqrt.pop %v474
      %v476 = vmul.f32 %v474, %v475
      %vm477 = vcmp.eq.f32.partialorder %v474, inf
      %v478 = vsel %vm477, %v474, %v476
      %vm479 = vcmp.eq.f32.partialorder %v474, 0.0
      %v480 = vand.u32 %v474, 2147483648
      %v481 = vsel %vm479, %v480, %v478
      %v482 = vmul.f32 %v481, %v473
      %v483 = vmax.f32 %v482, 0.0
      %v484 = vmin.f32 %v483, 0.999999
      %v485 = vadd.f32 %v484, 1.0
      %v486 = vsub.f32 1.0, %v484
      %v487 = vrcp.pop %v486
      %v488 = vmul.f32 %v485, %v487
      %v489 = vlog2.pop %v488
      %v490 = vmul.f32 %v489, 0.6931472
      %v491 = vsub.f32 %v490, 1.0
      %v492 = vmax.f32 %v491, 0.0
      %v493 = vmul.f32 %v243, %v492
      %v494 = vsub.f32 1.0, %v243
      %v495 = vsub.f32 3.0, %v490
      %v496 = vmax.f32 %v495, 0.0
      %v497 = vmul.f32 %v494, %v496
      %s498 = smul.u32 %s15, 8
      %v499 = vlaneseq
      %v500 = vshrl.u32 %v499, 7
      %v501 = vstv %s498
      %v502 = vadd.s32 %v501, %v500
      %v503 = vmul.u32 %v502, 4
      %v504 = vlaneseq
      %v505 = vand.u32 %v504, 127
      %v506 = vadd.s32 %v503, %v505
      %vm507 = vcmp.lt.s32.totalorder %v506, 64
      %v508 = vadd.f32 %v493, %v497
      %v509 = vsel %vm507, %v508, 0.0
      %vm510 = vcmask 31744
      %v511 = vsel %vm510, %v509, 0.0
      %512 = vadd.xlane.f32.xlu0 %v511
      %v513 = vpop.xlane.xlu0 %512
      %v514 = vrot.slane %v513, 4
      %v515 = vadd.f32 %v513, %v514
      %v516 = vrot.slane %v515, 2
      %v517 = vadd.f32 %v515, %v516
      %v518 = vrot.slane %v517, 1
      %v519 = vadd.f32 %v517, %v518
      %s520 = vtos %v519
      %v521 = vstv %s520
      %vm522 = vcmask 0
      %523 = vst.msk [vmem:[%s224] sm:$0x1] %vm522, %v521
      %p524 = scmp.lt.s32.totalorder %s15, 1
      %s525 = scalar_select %p524, %s15, 1
      %s526 = scalar_lea.vmem %s4, %s525
      // Predicated region
      $region37: #{clustering_contrastive_loss.1} parent=35 // pred_check
        %p527 = pneg %p132
      $region38: #{clustering_contrastive_loss.1} parent=35 // pred_check_branch
        %529 = sbr.rel (%p527) target = $region40
      $region39: #{clustering_contrastive_loss.1} parent=35 // pred_region
        _
      $region40: #{clustering_contrastive_loss.1} parent=35 // pred_fallthru
        _
    $region36: #{clustering_contrastive_loss.1} parent=5 // pred_fallthru
      _
    %p530 = scmp.le.s32.totalorder 2, %s10
    // Predicated region
    $region41: #{clustering_contrastive_loss.1} parent=5 // pred_check
      %p531 = pneg %p530
    $region42: #{clustering_contrastive_loss.1} parent=5 // pred_check_branch
      %533 = sbr.rel (%p531) target = $region44
    $region43: #{clustering_contrastive_loss.1} parent=5 // pred_region
      %s534 = ssub.s32 %s10, 2
      // Predicated region
      $region45: #{clustering_contrastive_loss.1} parent=43 // pred_check
        %p535 = pneg %p138
      $region46: #{clustering_contrastive_loss.1} parent=43 // pred_check_branch
        %537 = sbr.rel (%p535) target = $region48
      $region47: #{clustering_contrastive_loss.1} parent=43 // pred_region
        %p538 = scmp.lt.s32.totalorder %s16, 1
        %s539 = scalar_select %p538, %s16, 1
        %s540 = scalar_lea.vmem %s4, %s539
      $region48: #{clustering_contrastive_loss.1} parent=43 // pred_fallthru
        _
    $region44: #{clustering_contrastive_loss.1} parent=5 // pred_fallthru
      _
  $region6: #{clustering_contrastive_loss.1} parent=0 // loop_footer
    %s14 = sadd.s32 1, %s10
  $region7: #{clustering_contrastive_loss.1} parent=0 // loop_footer_branch
    %9 = sbr.rel target = $region3
  $region8: #{clustering_contrastive_loss.1} parent=0 // loop_exit
    _

</llo_original>
